<compile_context>
chip_gen: v7x
topology: tpu7x:2x2x1
jax: 0.10.0
libtpu: 0.0.40
codegen_flags: <defaults>
</compile_context>

<pallas_src>
import jax
import jax.numpy as jnp
from jax.experimental import pallas as pl
from jax.experimental.pallas import tpu as pltpu


# -----------------------------------------------------------------------------
# Kernel
# -----------------------------------------------------------------------------
def _causal_rn_kernel(
    x_ref,       # (2, TM, D_in)  bf16  : [factual slab, counterfactual slab]
    w_in_ref,    # (D_in, H)      bf16  : g.0 weight
    w_hid_ref,   # (4, H, H)      bf16  : g.2, g.4, f.0, f.2 weights (stacked)
    b_hid_ref,   # (5, 1, H)      f32   : g.0, g.2, g.4, f.0, f.2 biases
    w_out_ref,   # (H, O_pad)     bf16  : f.5 weight, zero-padded to 128 lanes
    b_out_ref,   # (1, O_pad)     f32   : f.5 bias, zero-padded
    o_ref,       # (TM, O_pad)    f32
):
    tm = x_ref.shape[1]
    d_in = x_ref.shape[2]

    def lin_relu(h, w, b):
        y = jnp.dot(h.astype(jnp.bfloat16), w,
                    preferred_element_type=jnp.float32) + b
        return jnp.maximum(y, 0.0)

    # Fused g(): one pass over the 2*TM stacked rows (factual on top,
    # counterfactual below) -> 3 matmuls instead of 6.  Collapsing the two
    # leading dims is a layout no-op (same bytes, same order).
    x2 = x_ref[...].reshape(2 * tm, d_in)                      # (2*TM, D_in) bf16

    h = lin_relu(x2, w_in_ref[...], b_hid_ref[0])              # g.0 + ReLU
    h = lin_relu(h, w_hid_ref[0], b_hid_ref[1])                # g.2 + ReLU
    h = lin_relu(h, w_hid_ref[1], b_hid_ref[2])                # g.4 + ReLU

    d = jnp.abs(h[:tm, :] - h[tm:, :])                         # |a - b|  (TM, H)

    h = lin_relu(d, w_hid_ref[2], b_hid_ref[3])                # f.0 + ReLU
    h = lin_relu(h, w_hid_ref[3], b_hid_ref[4])                # f.2 + ReLU
    # Dropout() is identity in eval mode.
    logits = jnp.dot(h.astype(jnp.bfloat16), w_out_ref[...],
                     preferred_element_type=jnp.float32) + b_out_ref[...]
    # Sigmoid with the divide pushed onto the EUP slot.
    o_ref[...] = pl.reciprocal(1.0 + jnp.exp(-logits), approx=True)


# -----------------------------------------------------------------------------
# Parameter init / packing
# -----------------------------------------------------------------------------
def init_params(key, input_size, mlp_hidden, output_size):
    """PyTorch-style uniform(-1/sqrt(fan_in), 1/sqrt(fan_in)) init.

    Weights stored transposed vs PyTorch: (in_features, out_features)."""
    dims = [
        (input_size, mlp_hidden),   # g.0
        (mlp_hidden, mlp_hidden),   # g.2
        (mlp_hidden, mlp_hidden),   # g.4
        (mlp_hidden, mlp_hidden),   # f.0
        (mlp_hidden, mlp_hidden),   # f.2
        (mlp_hidden, output_size),  # f.5
    ]
    params = []
    for (fan_in, fan_out) in dims:
        key, kw, kb = jax.random.split(key, 3)
        bound = 1.0 / jnp.sqrt(jnp.float32(fan_in))
        w = jax.random.uniform(kw, (fan_in, fan_out), jnp.float32, -bound, bound)
        b = jax.random.uniform(kb, (1, fan_out), jnp.float32, -bound, bound)
        params += [w, b]
    return params


def pack_params(params):
    """Consolidate 12 tiny tensors into 5 kernel buffers (bf16 weights,
    f32 biases, output head padded to a 128-lane multiple)."""
    (gw1, gb1, gw2, gb2, gw3, gb3, fw1, fb1, fw2, fb2, fw3, fb3) = params
    hidden = gw2.shape[0]
    out = fw3.shape[1]
    o_pad = max(128, pl.cdiv(out, 128) * 128)

    w_in = gw1.astype(jnp.bfloat16)                                   # (D, H)
    w_hid = jnp.stack([gw2, gw3, fw1, fw2]).astype(jnp.bfloat16)      # (4, H, H)
    b_hid = jnp.stack([gb1, gb2, gb3, fb1, fb2]).astype(jnp.float32)  # (5, 1, H)
    w_out = jnp.zeros((hidden, o_pad), jnp.float32).at[:, :out].set(fw3)
    w_out = w_out.astype(jnp.bfloat16)                                # (H, O_pad)
    b_out = jnp.zeros((1, o_pad), jnp.float32).at[:, :out].set(fb3)   # (1, O_pad)
    return (w_in, w_hid, b_hid, w_out, b_out)


# -----------------------------------------------------------------------------
# Wrapper
# -----------------------------------------------------------------------------
def causal_rn_classifier(x, x_agents, packed_params, output_size, *, tm=None):
    del x  # unused by the reference forward (kept for signature parity)
    w_in, w_hid, b_hid, w_out, b_out = packed_params
    batch = x_agents.shape[0]
    d_in = w_in.shape[0]
    hidden = w_in.shape[1]
    o_pad = w_out.shape[1]

    # (B, 2, D) -> (2, B, D): one contiguous slab per agent for clean DMAs.
    # bf16 activations halve the dominant HBM read traffic; matmuls still
    # accumulate in f32 on the MXU.
    x2 = jnp.transpose(x_agents.astype(jnp.bfloat16), (1, 0, 2))

    if tm is None:
        tm = min(batch, 512)         # multiple of 8 or the full batch
    nb = pl.cdiv(batch, tm)

    flops = int(
        2 * (2 * batch) * (d_in * hidden + 2 * hidden * hidden)   # fused g()
        + 2 * batch * (2 * hidden * hidden + hidden * o_pad)      # f()
    )
    transcendentals = int(2 * batch * o_pad)                      # exp + rcp
    bytes_accessed = int(
        x2.size * 2 + w_in.size * 2 + w_hid.size * 2 + b_hid.size * 4
        + w_out.size * 2 + b_out.size * 4 + batch * o_pad * 4
    )

    out_pad = pl.pallas_call(
        _causal_rn_kernel,
        out_shape=jax.ShapeDtypeStruct((batch, o_pad), jnp.float32),
        grid=(nb,),
        in_specs=[
            pl.BlockSpec((2, tm, d_in), lambda i: (0, i, 0)),        # inputs
            pl.BlockSpec((d_in, hidden), lambda i: (0, 0)),          # w_in
            pl.BlockSpec((4, hidden, hidden), lambda i: (0, 0, 0)),  # w_hid
            pl.BlockSpec((5, 1, hidden), lambda i: (0, 0, 0)),       # b_hid
            pl.BlockSpec((hidden, o_pad), lambda i: (0, 0)),         # w_out
            pl.BlockSpec((1, o_pad), lambda i: (0, 0)),              # b_out
        ],
        out_specs=pl.BlockSpec((tm, o_pad), lambda i: (i, 0)),
        compiler_params=pltpu.CompilerParams(
            dimension_semantics=("parallel",),
        ),
        cost_estimate=pl.CostEstimate(
            flops=flops,
            transcendentals=transcendentals,
            bytes_accessed=bytes_accessed,
        ),
    )(x2, w_in, w_hid, b_hid, w_out, b_out)

    return out_pad[:, :output_size]


# -----------------------------------------------------------------------------
# Demo + correctness check
# -----------------------------------------------------------------------------
if __name__ == "__main__":
    batch = 16
    input_size = 32
    mlp_hidden = 32
    output_size = 4

    key = jax.random.PRNGKey(0)
    key, kx, ka = jax.random.split(key, 3)
    x = jax.random.normal(kx, (batch, input_size), jnp.float32)   # unused by forward
    x_agents = jax.random.normal(ka, (batch, 2, input_size), jnp.float32)

    params = init_params(jax.random.PRNGKey(42), input_size, mlp_hidden, output_size)
    packed = pack_params(params)

    # tm=8 -> 2 grid steps, exercising the batch tiling path.
    out = causal_rn_classifier(x, x_agents, packed, output_size, tm=8)
    out = jax.block_until_ready(out)

    # Pure-JAX reference of the same math (mirrors bf16-operand / f32-accumulate).
    def ref_forward(x_agents, packed, output_size):
        w_in, w_hid, b_hid, w_out, b_out = packed
        b = x_agents.shape[0]
        xa = x_agents.astype(jnp.bfloat16)
        fa = xa[:, 0].reshape(b, -1)
        cf = xa[:, 1].reshape(b, -1)
        x2 = jnp.concatenate([fa, cf], axis=0)

        def lin_relu(h, w, bias):
            y = jnp.dot(h.astype(jnp.bfloat16), w,
                        preferred_element_type=jnp.float32) + bias
            return jnp.maximum(y, 0.0)

        h = lin_relu(x2, w_in, b_hid[0])
        h = lin_relu(h, w_hid[0], b_hid[1])
        h = lin_relu(h, w_hid[1], b_hid[2])
        d = jnp.abs(h[:b] - h[b:])
        h = lin_relu(d, w_hid[2], b_hid[3])
        h = lin_relu(h, w_hid[3], b_hid[4])
        logits = jnp.dot(h.astype(jnp.bfloat16), w_out,
                         preferred_element_type=jnp.float32) + b_out
        return jax.nn.sigmoid(logits)[:, :output_size]

    ref = ref_forward(x_agents, packed, output_size)
    assert out.shape == (batch, output_size)
    assert jnp.allclose(out, ref, atol=2e-2, rtol=0.0), (
        f"max abs err = {jnp.max(jnp.abs(out - ref))}")
    print("KERNEL_OK")
</pallas_src>

<mosaic_0001>
module attributes {stable_mosaic.version = 11 : i64} {
  func.func @_causal_rn_kernel(%arg0: i32, %arg1: memref<2x8x32xbf16, #tpu.memory_space<vmem>>, %arg2: memref<32x32xbf16, #tpu.memory_space<vmem>>, %arg3: memref<4x32x32xbf16, #tpu.memory_space<vmem>>, %arg4: memref<5x1x32xf32, #tpu.memory_space<vmem>>, %arg5: memref<32x128xbf16, #tpu.memory_space<vmem>>, %arg6: memref<1x128xf32, #tpu.memory_space<vmem>>, %arg7: memref<8x128xf32, #tpu.memory_space<vmem>>) attributes {dimension_semantics = [#tpu.dimension_semantics<parallel>], iteration_bounds = array<i64: 2>, scalar_prefetch = 0 : i64, scratch_operands = 0 : i64, tpu.core_type = #tpu.core_type<tc>, window_params = [{transform_indices = @transform_0, window_bounds = array<i64: 2, 8, 32>}, {pipeline_mode = #tpu.pipeline_mode<synchronous>, transform_indices = @transform_1, window_bounds = array<i64: 32, 32>}, {pipeline_mode = #tpu.pipeline_mode<synchronous>, transform_indices = @transform_2, window_bounds = array<i64: 4, 32, 32>}, {pipeline_mode = #tpu.pipeline_mode<synchronous>, transform_indices = @transform_3, window_bounds = array<i64: 5, 1, 32>}, {pipeline_mode = #tpu.pipeline_mode<synchronous>, transform_indices = @transform_4, window_bounds = array<i64: 32, 128>}, {pipeline_mode = #tpu.pipeline_mode<synchronous>, transform_indices = @transform_5, window_bounds = array<i64: 1, 128>}, {transform_indices = @transform_6, window_bounds = array<i64: 8, 128>}]} {
    %c0 = arith.constant 0 : index
    %c0_0 = arith.constant 0 : index
    %c0_1 = arith.constant 0 : index
    %0 = vector.load %arg1[%c0, %c0_0, %c0_1] : memref<2x8x32xbf16, #tpu.memory_space<vmem>>, vector<2x8x32xbf16>
    %1 = vector.shape_cast %0 : vector<2x8x32xbf16> to vector<16x32xbf16>
    %c0_2 = arith.constant 0 : index
    %c0_3 = arith.constant 0 : index
    %2 = vector.load %arg2[%c0_2, %c0_3] : memref<32x32xbf16, #tpu.memory_space<vmem>>, vector<32x32xbf16>
    %c0_4 = arith.constant 0 : index
    %c0_5 = arith.constant 0 : index
    %c0_6 = arith.constant 0 : index
    %3 = vector.load %arg4[%c0_4, %c0_5, %c0_6] : memref<5x1x32xf32, #tpu.memory_space<vmem>>, vector<1x1x32xf32>
    %4 = vector.shape_cast %3 : vector<1x1x32xf32> to vector<1x32xf32>
    %cst = arith.constant dense<0.000000e+00> : vector<16x32xf32>
    %5 = tpu.matmul %1, %2, %cst {dimension_numbers = #tpu.dot_dimension_numbers<[1], [0], [0], [1], [0, 0, 1, 1], [], []>} : vector<16x32xbf16>, vector<32x32xbf16>, vector<16x32xf32> -> vector<16x32xf32>
    %6 = vector.broadcast %4 : vector<1x32xf32> to vector<16x32xf32>
    %7 = arith.addf %5, %6 : vector<16x32xf32>
    %cst_7 = arith.constant 0.000000e+00 : f32
    %8 = vector.broadcast %cst_7 : f32 to vector<16x32xf32>
    %9 = arith.maximumf %7, %8 : vector<16x32xf32>
    %c0_8 = arith.constant 0 : index
    %c0_9 = arith.constant 0 : index
    %c0_10 = arith.constant 0 : index
    %10 = vector.load %arg3[%c0_8, %c0_9, %c0_10] : memref<4x32x32xbf16, #tpu.memory_space<vmem>>, vector<1x32x32xbf16>
    %11 = vector.shape_cast %10 : vector<1x32x32xbf16> to vector<32x32xbf16>
    %c1 = arith.constant 1 : index
    %c0_11 = arith.constant 0 : index
    %c0_12 = arith.constant 0 : index
    %12 = vector.load %arg4[%c1, %c0_11, %c0_12] : memref<5x1x32xf32, #tpu.memory_space<vmem>>, vector<1x1x32xf32>
    %13 = vector.shape_cast %12 : vector<1x1x32xf32> to vector<1x32xf32>
    %14 = arith.truncf %9 : vector<16x32xf32> to vector<16x32xbf16>
    %cst_13 = arith.constant dense<0.000000e+00> : vector<16x32xf32>
    %15 = tpu.matmul %14, %11, %cst_13 {dimension_numbers = #tpu.dot_dimension_numbers<[1], [0], [0], [1], [0, 0, 1, 1], [], []>} : vector<16x32xbf16>, vector<32x32xbf16>, vector<16x32xf32> -> vector<16x32xf32>
    %16 = vector.broadcast %13 : vector<1x32xf32> to vector<16x32xf32>
    %17 = arith.addf %15, %16 : vector<16x32xf32>
    %cst_14 = arith.constant 0.000000e+00 : f32
    %18 = vector.broadcast %cst_14 : f32 to vector<16x32xf32>
    %19 = arith.maximumf %17, %18 : vector<16x32xf32>
    %c1_15 = arith.constant 1 : index
    %c0_16 = arith.constant 0 : index
    %c0_17 = arith.constant 0 : index
    %20 = vector.load %arg3[%c1_15, %c0_16, %c0_17] : memref<4x32x32xbf16, #tpu.memory_space<vmem>>, vector<1x32x32xbf16>
    %21 = vector.shape_cast %20 : vector<1x32x32xbf16> to vector<32x32xbf16>
    %c2 = arith.constant 2 : index
    %c0_18 = arith.constant 0 : index
    %c0_19 = arith.constant 0 : index
    %22 = vector.load %arg4[%c2, %c0_18, %c0_19] : memref<5x1x32xf32, #tpu.memory_space<vmem>>, vector<1x1x32xf32>
    %23 = vector.shape_cast %22 : vector<1x1x32xf32> to vector<1x32xf32>
    %24 = arith.truncf %19 : vector<16x32xf32> to vector<16x32xbf16>
    %cst_20 = arith.constant dense<0.000000e+00> : vector<16x32xf32>
    %25 = tpu.matmul %24, %21, %cst_20 {dimension_numbers = #tpu.dot_dimension_numbers<[1], [0], [0], [1], [0, 0, 1, 1], [], []>} : vector<16x32xbf16>, vector<32x32xbf16>, vector<16x32xf32> -> vector<16x32xf32>
    %26 = vector.broadcast %23 : vector<1x32xf32> to vector<16x32xf32>
    %27 = arith.addf %25, %26 : vector<16x32xf32>
    %cst_21 = arith.constant 0.000000e+00 : f32
    %28 = vector.broadcast %cst_21 : f32 to vector<16x32xf32>
    %29 = arith.maximumf %27, %28 : vector<16x32xf32>
    %30 = vector.extract_strided_slice %29 {offsets = [0, 0], sizes = [8, 32], strides = [1, 1]} : vector<16x32xf32> to vector<8x32xf32>
    %31 = vector.extract_strided_slice %29 {offsets = [8, 0], sizes = [8, 32], strides = [1, 1]} : vector<16x32xf32> to vector<8x32xf32>
    %32 = arith.subf %30, %31 : vector<8x32xf32>
    %33 = math.absf %32 : vector<8x32xf32>
    %c2_22 = arith.constant 2 : index
    %c0_23 = arith.constant 0 : index
    %c0_24 = arith.constant 0 : index
    %34 = vector.load %arg3[%c2_22, %c0_23, %c0_24] : memref<4x32x32xbf16, #tpu.memory_space<vmem>>, vector<1x32x32xbf16>
    %35 = vector.shape_cast %34 : vector<1x32x32xbf16> to vector<32x32xbf16>
    %c3 = arith.constant 3 : index
    %c0_25 = arith.constant 0 : index
    %c0_26 = arith.constant 0 : index
    %36 = vector.load %arg4[%c3, %c0_25, %c0_26] : memref<5x1x32xf32, #tpu.memory_space<vmem>>, vector<1x1x32xf32>
    %37 = vector.shape_cast %36 : vector<1x1x32xf32> to vector<1x32xf32>
    %38 = arith.truncf %33 : vector<8x32xf32> to vector<8x32xbf16>
    %cst_27 = arith.constant dense<0.000000e+00> : vector<8x32xf32>
    %39 = tpu.matmul %38, %35, %cst_27 {dimension_numbers = #tpu.dot_dimension_numbers<[1], [0], [0], [1], [0, 0, 1, 1], [], []>} : vector<8x32xbf16>, vector<32x32xbf16>, vector<8x32xf32> -> vector<8x32xf32>
    %40 = vector.broadcast %37 : vector<1x32xf32> to vector<8x32xf32>
    %41 = arith.addf %39, %40 : vector<8x32xf32>
    %cst_28 = arith.constant 0.000000e+00 : f32
    %42 = vector.broadcast %cst_28 : f32 to vector<8x32xf32>
    %43 = arith.maximumf %41, %42 : vector<8x32xf32>
    %c3_29 = arith.constant 3 : index
    %c0_30 = arith.constant 0 : index
    %c0_31 = arith.constant 0 : index
    %44 = vector.load %arg3[%c3_29, %c0_30, %c0_31] : memref<4x32x32xbf16, #tpu.memory_space<vmem>>, vector<1x32x32xbf16>
    %45 = vector.shape_cast %44 : vector<1x32x32xbf16> to vector<32x32xbf16>
    %c4 = arith.constant 4 : index
    %c0_32 = arith.constant 0 : index
    %c0_33 = arith.constant 0 : index
    %46 = vector.load %arg4[%c4, %c0_32, %c0_33] : memref<5x1x32xf32, #tpu.memory_space<vmem>>, vector<1x1x32xf32>
    %47 = vector.shape_cast %46 : vector<1x1x32xf32> to vector<1x32xf32>
    %48 = arith.truncf %43 : vector<8x32xf32> to vector<8x32xbf16>
    %cst_34 = arith.constant dense<0.000000e+00> : vector<8x32xf32>
    %49 = tpu.matmul %48, %45, %cst_34 {dimension_numbers = #tpu.dot_dimension_numbers<[1], [0], [0], [1], [0, 0, 1, 1], [], []>} : vector<8x32xbf16>, vector<32x32xbf16>, vector<8x32xf32> -> vector<8x32xf32>
    %50 = vector.broadcast %47 : vector<1x32xf32> to vector<8x32xf32>
    %51 = arith.addf %49, %50 : vector<8x32xf32>
    %cst_35 = arith.constant 0.000000e+00 : f32
    %52 = vector.broadcast %cst_35 : f32 to vector<8x32xf32>
    %53 = arith.maximumf %51, %52 : vector<8x32xf32>
    %54 = arith.truncf %53 : vector<8x32xf32> to vector<8x32xbf16>
    %c0_36 = arith.constant 0 : index
    %c0_37 = arith.constant 0 : index
    %55 = vector.load %arg5[%c0_36, %c0_37] : memref<32x128xbf16, #tpu.memory_space<vmem>>, vector<32x128xbf16>
    %cst_38 = arith.constant dense<0.000000e+00> : vector<8x128xf32>
    %56 = tpu.matmul %54, %55, %cst_38 {dimension_numbers = #tpu.dot_dimension_numbers<[1], [0], [0], [1], [0, 0, 1, 1], [], []>} : vector<8x32xbf16>, vector<32x128xbf16>, vector<8x128xf32> -> vector<8x128xf32>
    %c0_39 = arith.constant 0 : index
    %c0_40 = arith.constant 0 : index
    %57 = vector.load %arg6[%c0_39, %c0_40] : memref<1x128xf32, #tpu.memory_space<vmem>>, vector<1x128xf32>
    %58 = vector.broadcast %57 : vector<1x128xf32> to vector<8x128xf32>
    %59 = arith.addf %56, %58 : vector<8x128xf32>
    %cst_41 = arith.constant 0.000000e+00 : f32
    %60 = vector.broadcast %cst_41 : f32 to vector<8x128xf32>
    %61 = arith.subf %60, %59 : vector<8x128xf32>
    %62 = math.exp %61 : vector<8x128xf32>
    %cst_42 = arith.constant 1.000000e+00 : f32
    %63 = vector.broadcast %cst_42 : f32 to vector<8x128xf32>
    %64 = arith.addf %63, %62 : vector<8x128xf32>
    %65 = tpu.reciprocal %64 {approx = true} : vector<8x128xf32> -> vector<8x128xf32>
    %c0_43 = arith.constant 0 : index
    %c0_44 = arith.constant 0 : index
    %66 = vector.load %arg7[%c0_43, %c0_44] : memref<8x128xf32, #tpu.memory_space<vmem>>, vector<8x128xf32>
    tpu.vector_store %arg7[%c0_43, %c0_44], %65 {strides = array<i32>} : memref<8x128xf32, #tpu.memory_space<vmem>>, vector<8x128xf32>,
    return
  }
  func.func @transform_0(%arg0: i32) -> (i32, i32, i32) {
    %c0_i32 = arith.constant 0 : i32
    %c0_i32_0 = arith.constant 0 : i32
    %c0_i32_1 = arith.constant 0 : i32
    return %c0_i32, %arg0, %c0_i32_0 : i32, i32, i32
  }
  func.func @transform_1(%arg0: i32) -> (i32, i32) {
    %c0_i32 = arith.constant 0 : i32
    %c0_i32_0 = arith.constant 0 : i32
    %c0_i32_1 = arith.constant 0 : i32
    return %c0_i32, %c0_i32_0 : i32, i32
  }
  func.func @transform_2(%arg0: i32) -> (i32, i32, i32) {
    %c0_i32 = arith.constant 0 : i32
    %c0_i32_0 = arith.constant 0 : i32
    %c0_i32_1 = arith.constant 0 : i32
    %c0_i32_2 = arith.constant 0 : i32
    return %c0_i32, %c0_i32_0, %c0_i32_1 : i32, i32, i32
  }
  func.func @transform_3(%arg0: i32) -> (i32, i32, i32) {
    %c0_i32 = arith.constant 0 : i32
    %c0_i32_0 = arith.constant 0 : i32
    %c0_i32_1 = arith.constant 0 : i32
    %c0_i32_2 = arith.constant 0 : i32
    return %c0_i32, %c0_i32_0, %c0_i32_1 : i32, i32, i32
  }
  func.func @transform_4(%arg0: i32) -> (i32, i32) {
    %c0_i32 = arith.constant 0 : i32
    %c0_i32_0 = arith.constant 0 : i32
    %c0_i32_1 = arith.constant 0 : i32
    return %c0_i32, %c0_i32_0 : i32, i32
  }
  func.func @transform_5(%arg0: i32) -> (i32, i32) {
    %c0_i32 = arith.constant 0 : i32
    %c0_i32_0 = arith.constant 0 : i32
    %c0_i32_1 = arith.constant 0 : i32
    return %c0_i32, %c0_i32_0 : i32, i32
  }
  func.func @transform_6(%arg0: i32) -> (i32, i32) {
    %c0_i32 = arith.constant 0 : i32
    %c0_i32_0 = arith.constant 0 : i32
    return %arg0, %c0_i32 : i32, i32
  }
}

</mosaic_0001>

<llo_original>
// kernel: tpu_custom_call.1
$region0: #{tpu_custom_call.1}
  #allocation0 [shape = 'u32[]', space=smem, size = 0x4, offset = 0x4, fixed_abs, tag = 'smem constant byte address 0x4 - core index']
  #allocation1 [shape = 'u32[144,128]{1,0:T(1,128)}', space=vmem, size = 0x12000, scoped, tag = 'internal scratch']
  %s0 = inlined_call_operand.hbm [shape: bf16[2,16,32], index: 0, kind: input, shape index: {}]
  %s1 = inlined_call_operand.hbm [shape: bf16[32,32], index: 1, kind: input, shape index: {}]
  %s2 = inlined_call_operand.hbm [shape: bf16[4,32,32], index: 2, kind: input, shape index: {}]
  %s3 = inlined_call_operand.vmem [shape: f32[5,1,32], index: 3, kind: input, shape index: {}]
  %s4 = inlined_call_operand.hbm [shape: bf16[32,128], index: 4, kind: input, shape index: {}]
  %s5 = inlined_call_operand.vmem [shape: f32[1,128], index: 5, kind: input, shape index: {}]
  %s6 = inlined_call_operand.hbm [shape: f32[16,128], index: 6, kind: output, shape index: {}]
  %s7 = sld [smem:[#allocation0]]
  $region73: #{tpu_custom_call.1} parent=0
    _
  %s9 = ssub.s32 1, %s7
  %s10 = scalar_select 0, %s9, %s7
  $region1: #{tpu_custom_call.1} parent=0
    #allocation2 [shape = 'u8[8192]{0}', space=vmem, size = 0x2000, scoped, tag = 'input window, operand 0']
    #allocation3 [shape = 's32[2]{0}', space=sflag, size = 0x8, scoped, tag = 'scoped memory for tpu_custom_call.1']
    #allocation4 [shape = 's32[2]{0}', space=sflag, size = 0x8, scoped, tag = 'scoped memory for tpu_custom_call.1']
    #allocation5 [shape = 'u8[8192]{0}', space=vmem, size = 0x2000, scoped, tag = 'input window, operand 1, single buffered']
    #allocation6 [shape = 's32[1]{0}', space=sflag, size = 0x4, scoped, tag = 'scoped memory for tpu_custom_call.1']
    #allocation7 [shape = 'u8[32768]{0}', space=vmem, size = 0x8000, scoped, tag = 'input window, operand 2, single buffered']
    #allocation8 [shape = 'u8[8192]{0}', space=vmem, size = 0x2000, scoped, tag = 'input window, operand 4, single buffered']
    #allocation9 [shape = 's32[1]{0}', space=sflag, size = 0x4, scoped, tag = 'scoped memory for tpu_custom_call.1']
    #allocation10 [shape = 'u8[8192]{0}', space=vmem, size = 0x2000, scoped, tag = 'output window, operand 0']
    %11 = vsyncpa [#allocation3], 0
    %s12 = scalar_lea.sflag [#allocation3], 1
    %13 = vsyncpa %s12, 0
    %14 = vsyncpa [#allocation6], 0
    %15 = vsyncpa [#allocation9], 0
    %16 = vsyncpa [#allocation4], 0
    %s17 = scalar_lea.sflag [#allocation4], 1
    %18 = vsyncpa %s17, 0
    loop: start=0, step=1, limit=4
    $region2: #{tpu_custom_call.1} parent=1 // loop_pre_header
      _
    $region3: #{tpu_custom_call.1} parent=1 // loop_header
      %s20 = sphi 0, %s24
      %p21 = scmp.ge.s32.totalorder %s20, 4
      %s30 = sphi 0, %s32
      %s33 = sphi 0, %s30
      %s34 = sphi 0, %s33
      %s50 = sphi 0, %s34
      %s54 = sphi 0, %s54
      %s56 = sphi 0, %s54
      %s57 = sphi 0, %s56
      %s71 = sphi 0, %s57
      %s75 = sphi 0, %s75
      %s77 = sphi 0, %s75
      %s78 = sphi 0, %s77
      %s92 = sphi 0, %s78
      %s96 = sphi 0, %s96
      %s98 = sphi 0, %s96
      %s99 = sphi 0, %s98
      %s113 = sphi 0, %s99
      %s117 = sphi 0, %s117
      %s119 = sphi 0, %s117
      %s120 = sphi 0, %s119
      %s134 = sphi 0, %s120
      %s138 = sphi 0, %s138
      %s140 = sphi 0, %s138
      %s141 = sphi 0, %s140
      %s155 = sphi 0, %s141
      %s161 = sphi 0, %s163
      %s164 = sphi 0, %s161
      %s165 = sphi 0, %s164
      %s181 = sphi 0, %s165
    $region4: #{tpu_custom_call.1} parent=1 // loop_header_branch
      %23 = sbr.rel (%p21) target = $region8
    $region5: #{tpu_custom_call.1} parent=1 // loop_body
      %s25 = ssub.s32 %s20, 1
      %s26 = ssub.s32 %s20, 2
      %s27 = sadd.s32 %s20, 1
      %s28 = ssub.s32 %s20, %s27
      %p29 = scmp.eq.s32.totalorder %s28, 0
      %s31 = sadd.s32 %s30, 1
      %s32 = scalar_select %p29, %s30, %s31
      %p35 = pneg %p29
      %p36 = scmp.eq.s32.totalorder %s20, 1
      %p37 = por %p35, %p36
      %p38 = scmp.ne.s32.totalorder %s30, %s33
      %p39 = scmp.eq.s32.totalorder %s20, 0
      %p40 = por %p38, %p39
      %p41 = scmp.ne.s32.totalorder %s30, %s33
      %p42 = scmp.eq.s32.totalorder %s25, 1
      %p43 = por %p41, %p42
      %p44 = scmp.ne.s32.totalorder %s33, %s34
      %p45 = scmp.eq.s32.totalorder %s25, 0
      %p46 = por %p44, %p45
      %p47 = scmp.ne.s32.totalorder %s33, %s34
      %p48 = scmp.eq.s32.totalorder %s26, 1
      %p49 = por %p47, %p48
      %p51 = scmp.ne.s32.totalorder %s34, %s50
      %p52 = scmp.eq.s32.totalorder %s26, 0
      %p53 = por %p51, %p52
      %s55 = sadd.s32 %s54, 1
      %p58 = scmp.eq.s32.totalorder %s20, 1
      %p59 = scmp.ne.s32.totalorder %s54, %s56
      %p60 = scmp.eq.s32.totalorder %s20, 0
      %p61 = por %p59, %p60
      %p62 = scmp.ne.s32.totalorder %s54, %s56
      %p63 = scmp.eq.s32.totalorder %s25, 1
      %p64 = por %p62, %p63
      %p65 = scmp.ne.s32.totalorder %s56, %s57
      %p66 = scmp.eq.s32.totalorder %s25, 0
      %p67 = por %p65, %p66
      %p68 = scmp.ne.s32.totalorder %s56, %s57
      %p69 = scmp.eq.s32.totalorder %s26, 1
      %p70 = por %p68, %p69
      %p72 = scmp.ne.s32.totalorder %s57, %s71
      %p73 = scmp.eq.s32.totalorder %s26, 0
      %p74 = por %p72, %p73
      %s76 = sadd.s32 %s75, 1
      %p79 = scmp.eq.s32.totalorder %s20, 1
      %p80 = scmp.ne.s32.totalorder %s75, %s77
      %p81 = scmp.eq.s32.totalorder %s20, 0
      %p82 = por %p80, %p81
      %p83 = scmp.ne.s32.totalorder %s75, %s77
      %p84 = scmp.eq.s32.totalorder %s25, 1
      %p85 = por %p83, %p84
      %p86 = scmp.ne.s32.totalorder %s77, %s78
      %p87 = scmp.eq.s32.totalorder %s25, 0
      %p88 = por %p86, %p87
      %p89 = scmp.ne.s32.totalorder %s77, %s78
      %p90 = scmp.eq.s32.totalorder %s26, 1
      %p91 = por %p89, %p90
      %p93 = scmp.ne.s32.totalorder %s78, %s92
      %p94 = scmp.eq.s32.totalorder %s26, 0
      %p95 = por %p93, %p94
      %s97 = sadd.s32 %s96, 1
      %p100 = scmp.eq.s32.totalorder %s20, 1
      %p101 = scmp.ne.s32.totalorder %s96, %s98
      %p102 = scmp.eq.s32.totalorder %s20, 0
      %p103 = por %p101, %p102
      %p104 = scmp.ne.s32.totalorder %s96, %s98
      %p105 = scmp.eq.s32.totalorder %s25, 1
      %p106 = por %p104, %p105
      %p107 = scmp.ne.s32.totalorder %s98, %s99
      %p108 = scmp.eq.s32.totalorder %s25, 0
      %p109 = por %p107, %p108
      %p110 = scmp.ne.s32.totalorder %s98, %s99
      %p111 = scmp.eq.s32.totalorder %s26, 1
      %p112 = por %p110, %p111
      %p114 = scmp.ne.s32.totalorder %s99, %s113
      %p115 = scmp.eq.s32.totalorder %s26, 0
      %p116 = por %p114, %p115
      %s118 = sadd.s32 %s117, 1
      %p121 = scmp.eq.s32.totalorder %s20, 1
      %p122 = scmp.ne.s32.totalorder %s117, %s119
      %p123 = scmp.eq.s32.totalorder %s20, 0
      %p124 = por %p122, %p123
      %p125 = scmp.ne.s32.totalorder %s117, %s119
      %p126 = scmp.eq.s32.totalorder %s25, 1
      %p127 = por %p125, %p126
      %p128 = scmp.ne.s32.totalorder %s119, %s120
      %p129 = scmp.eq.s32.totalorder %s25, 0
      %p130 = por %p128, %p129
      %p131 = scmp.ne.s32.totalorder %s119, %s120
      %p132 = scmp.eq.s32.totalorder %s26, 1
      %p133 = por %p131, %p132
      %p135 = scmp.ne.s32.totalorder %s120, %s134
      %p136 = scmp.eq.s32.totalorder %s26, 0
      %p137 = por %p135, %p136
      %s139 = sadd.s32 %s138, 1
      %p142 = scmp.eq.s32.totalorder %s20, 1
      %p143 = scmp.ne.s32.totalorder %s138, %s140
      %p144 = scmp.eq.s32.totalorder %s20, 0
      %p145 = por %p143, %p144
      %p146 = scmp.ne.s32.totalorder %s138, %s140
      %p147 = scmp.eq.s32.totalorder %s25, 1
      %p148 = por %p146, %p147
      %p149 = scmp.ne.s32.totalorder %s140, %s141
      %p150 = scmp.eq.s32.totalorder %s25, 0
      %p151 = por %p149, %p150
      %p152 = scmp.ne.s32.totalorder %s140, %s141
      %p153 = scmp.eq.s32.totalorder %s26, 1
      %p154 = por %p152, %p153
      %p156 = scmp.ne.s32.totalorder %s141, %s155
      %p157 = scmp.eq.s32.totalorder %s26, 0
      %p158 = por %p156, %p157
      %s159 = ssub.s32 %s20, %s27
      %p160 = scmp.eq.s32.totalorder %s159, 0
      %s162 = sadd.s32 %s161, 1
      %s163 = scalar_select %p160, %s161, %s162
      %p166 = pneg %p160
      %p167 = scmp.eq.s32.totalorder %s20, 1
      %p168 = por %p166, %p167
      %p169 = scmp.ne.s32.totalorder %s161, %s164
      %p170 = scmp.eq.s32.totalorder %s20, 0
      %p171 = por %p169, %p170
      %p172 = scmp.ne.s32.totalorder %s161, %s164
      %p173 = scmp.eq.s32.totalorder %s25, 1
      %p174 = por %p172, %p173
      %p175 = scmp.ne.s32.totalorder %s164, %s165
      %p176 = scmp.eq.s32.totalorder %s25, 0
      %p177 = por %p175, %p176
      %p178 = scmp.ne.s32.totalorder %s164, %s165
      %p179 = scmp.eq.s32.totalorder %s26, 1
      %p180 = por %p178, %p179
      %p182 = scmp.ne.s32.totalorder %s165, %s181
      %p183 = scmp.eq.s32.totalorder %s26, 0
      %p184 = por %p182, %p183
      %p185 = scmp.le.s32.totalorder 1, %s20
      %p186 = scmp.lt.s32.totalorder %s20, 3
      %p187 = pnand %p185, %p186
      %p188 = pneg %p187
      // Predicated region
      $region9: #{tpu_custom_call.1} parent=5 // pred_check
        _
      $region10: #{tpu_custom_call.1} parent=5 // pred_check_branch
        %190 = sbr.rel (%p187) target = $region12
      $region11: #{tpu_custom_call.1} parent=5 // pred_region
        %s191 = ssub.s32 %s20, 1
        // Predicated region
        $region13: #{tpu_custom_call.1} parent=11 // pred_check
          %p192 = pneg %p67
        $region14: #{tpu_custom_call.1} parent=11 // pred_check_branch
          %194 = sbr.rel (%p192) target = $region16
        $region15: #{tpu_custom_call.1} parent=11 // pred_region
          %s196 = ssub.s32 256, 256
          %197 = vsyncadd [#allocation6], %s196
          %s198 = sshll.u32 [#allocation5], 4
          %s199 = int_to_ptr.vmem [resolvable:$true] %s198
          %204 = dma.hbm_to_vmem [thread:$0]  %s1, 256, %s199, [#allocation6], 64, 64, 4
        $region16: #{tpu_custom_call.1} parent=11 // pred_fallthru
          _
        // Predicated region
        $region17: #{tpu_custom_call.1} parent=11 // pred_check
          %p205 = pneg %p88
        $region18: #{tpu_custom_call.1} parent=11 // pred_check_branch
          %207 = sbr.rel (%p205) target = $region20
        $region19: #{tpu_custom_call.1} parent=11 // pred_region
          %s209 = ssub.s32 1024, 1024
          %210 = vsyncadd [#allocation6], %s209
          %s211 = sshll.u32 [#allocation7], 4
          %s212 = int_to_ptr.vmem [resolvable:$true] %s211
          %217 = dma.hbm_to_vmem [thread:$0]  %s2, 1024, %s212, [#allocation6], 64, 64, 4
        $region20: #{tpu_custom_call.1} parent=11 // pred_fallthru
          _
        // Predicated region
        $region21: #{tpu_custom_call.1} parent=11 // pred_check
          %p218 = pneg %p109
        $region22: #{tpu_custom_call.1} parent=11 // pred_check_branch
          %220 = sbr.rel (%p218) target = $region24
        $region23: #{tpu_custom_call.1} parent=11 // pred_region
          _
        $region24: #{tpu_custom_call.1} parent=11 // pred_fallthru
          _
        // Predicated region
        $region25: #{tpu_custom_call.1} parent=11 // pred_check
          %p221 = pneg %p130
        $region26: #{tpu_custom_call.1} parent=11 // pred_check_branch
          %223 = sbr.rel (%p221) target = $region28
        $region27: #{tpu_custom_call.1} parent=11 // pred_region
          %s225 = ssub.s32 256, 256
          %226 = vsyncadd [#allocation9], %s225
          %s227 = sshll.u32 [#allocation8], 4
          %s228 = int_to_ptr.vmem [resolvable:$true] %s227
          %233 = dma.hbm_to_vmem [thread:$0]  %s4, 256, %s228, [#allocation9], 64, 64, 4
        $region28: #{tpu_custom_call.1} parent=11 // pred_fallthru
          _
        // Predicated region
        $region29: #{tpu_custom_call.1} parent=11 // pred_check
          %p234 = pneg %p151
        $region30: #{tpu_custom_call.1} parent=11 // pred_check_branch
          %236 = sbr.rel (%p234) target = $region32
        $region31: #{tpu_custom_call.1} parent=11 // pred_region
          _
        $region32: #{tpu_custom_call.1} parent=11 // pred_fallthru
          _
      $region12: #{tpu_custom_call.1} parent=5 // pred_fallthru
        _
      %p237 = scmp.lt.s32.totalorder %s20, 2
      // Predicated region
      $region33: #{tpu_custom_call.1} parent=5 // pred_check
        %p238 = pneg %p237
      $region34: #{tpu_custom_call.1} parent=5 // pred_check_branch
        %240 = sbr.rel (%p238) target = $region36
      $region35: #{tpu_custom_call.1} parent=5 // pred_region
        // Predicated region
        $region37: #{tpu_custom_call.1} parent=35 // pred_check
          %p241 = pneg %p40
        $region38: #{tpu_custom_call.1} parent=35 // pred_check_branch
          %243 = sbr.rel (%p241) target = $region40
        $region39: #{tpu_custom_call.1} parent=35 // pred_region
          %s244 = sand.u32 %s30, 1
          %s245 = scalar_lea.sflag [#allocation3], %s244
          %s246 = sand.u32 %s30, 1
          %s247 = smul.addr %s246, 8
          %s248 = scalar_lea.vmem [#allocation2], %s247
          %s250 = ssub.s32 128, 128
          %251 = vsyncadd %s245, %s250
          %s252 = smul.addr %s20, 64
          %s253 = scalar_lea.hbm %s0, %s252
          %s254 = sshll.u32 %s248, 4
          %s255 = int_to_ptr.vmem [resolvable:$true] %s254
          %260 = dma.hbm_to_vmem [thread:$0]  %s253, 128, %s255, %s245, 128, 64, 4
        $region40: #{tpu_custom_call.1} parent=35 // pred_fallthru
          _
      $region36: #{tpu_custom_call.1} parent=5 // pred_fallthru
        _
      %p261 = scmp.le.s32.totalorder 1, %s20
      %p262 = scmp.lt.s32.totalorder %s20, 3
      %p263 = pnand %p261, %p262
      %p264 = pneg %p263
      // Predicated region
      $region41: #{tpu_custom_call.1} parent=5 // pred_check
        _
      $region42: #{tpu_custom_call.1} parent=5 // pred_check_branch
        %266 = sbr.rel (%p263) target = $region44
      $region43: #{tpu_custom_call.1} parent=5 // pred_region
        %s267 = ssub.s32 %s20, 1
        %s268 = sand.u32 %s33, 1
        %s269 = scalar_lea.sflag [#allocation3], %s268
        %s270 = sand.u32 %s33, 1
        %s271 = smul.addr %s270, 8
        %s272 = scalar_lea.vmem [#allocation2], %s271
        // Predicated region
        $region45: #{tpu_custom_call.1} parent=43 // pred_check
          %p273 = pneg %p46
        $region46: #{tpu_custom_call.1} parent=43 // pred_check_branch
          %275 = sbr.rel (%p273) target = $region48
        $region47: #{tpu_custom_call.1} parent=43 // pred_region
          %276 = dma.done %s269, 128
        $region48: #{tpu_custom_call.1} parent=43 // pred_fallthru
          _
        // Predicated region
        $region49: #{tpu_custom_call.1} parent=43 // pred_check
          %p277 = pneg %p67
        $region50: #{tpu_custom_call.1} parent=43 // pred_check_branch
          %279 = sbr.rel (%p277) target = $region52
        $region51: #{tpu_custom_call.1} parent=43 // pred_region
          %280 = dma.done [#allocation6], 256
        $region52: #{tpu_custom_call.1} parent=43 // pred_fallthru
          _
        // Predicated region
        $region53: #{tpu_custom_call.1} parent=43 // pred_check
          %p281 = pneg %p88
        $region54: #{tpu_custom_call.1} parent=43 // pred_check_branch
          %283 = sbr.rel (%p281) target = $region56
        $region55: #{tpu_custom_call.1} parent=43 // pred_region
          %284 = dma.done [#allocation6], 1024
        $region56: #{tpu_custom_call.1} parent=43 // pred_fallthru
          _
        // Predicated region
        $region57: #{tpu_custom_call.1} parent=43 // pred_check
          %p285 = pneg %p130
        $region58: #{tpu_custom_call.1} parent=43 // pred_check_branch
          %287 = sbr.rel (%p285) target = $region60
        $region59: #{tpu_custom_call.1} parent=43 // pred_region
          %288 = dma.done [#allocation9], 256
        $region60: #{tpu_custom_call.1} parent=43 // pred_fallthru
          _
        %s289 = sand.u32 %s33, 1
        %s290 = scalar_lea.sflag [#allocation3], %s289
        %s291 = sand.u32 %s33, 1
        %s292 = smul.addr %s291, 8
        %s293 = scalar_lea.vmem [#allocation2], %s292
        %p294 = pneg %p46
        %p295 = pneg %p43
        %p296 = pneg %p67
        %p297 = pneg %p64
        %p298 = pneg %p88
        %p299 = pneg %p85
        %p300 = pneg %p109
        %p301 = pneg %p106
        %p302 = pneg %p130
        %p303 = pneg %p127
        %p304 = pneg %p151
        %p305 = pneg %p148
        %p306 = pneg %p177
        %p307 = pneg %p174
        %s308 = sand.u32 %s164, 1
        %s309 = scalar_lea.sflag [#allocation4], %s308
        %s310 = sand.u32 %s164, 1
        %s311 = smul.addr %s310, 8
        %s312 = scalar_lea.vmem [#allocation10], %s311
        %v314 = vld [vmem:[%s272] sm:$0xf]
        %v315 = vld [vmem:[%s272 + $0x4] sm:$0xf]
        %v316 = vld [vmem:[#allocation5] sm:$0xf]
        %v317 = vld [vmem:[#allocation5 + $0x4] sm:$0xf]
        %v318 = vld [vmem:[#allocation5 + $0x8] sm:$0xf]
        %v319 = vld [vmem:[#allocation5 + $0xc] sm:$0xf]
        %v320 = vld [vmem:[%s3] sm:$0x1]
        %v322 = vlaneseq
        %v323 = vshrl.u32 %v322, 7
        %v324 = vsub.s32 0, %v323
        %v325 = vrot.slane %v320, %v324
        %v329 = vunpack.c.l.b16 %v314
        %v330 = vunpack.c.l.b16 %v315
        %v331 = vpack.c.b16 %v330, %v329
        %v336 = vunpack.c.l.b16 %v316
        %v337 = vunpack.c.l.b16 %v317
        %v338 = vunpack.c.l.b16 %v318
        %v339 = vunpack.c.l.b16 %v319
        %v340 = vpack.c.b16 %v337, %v336
        %v341 = vpack.c.b16 %v339, %v338
        %vm344 = vcmask 261120
        %v346 = vsel %vm344, %v331, 0
        %348 = vmatprep.subr.bf16.mxu0 0
        %349 = vmatpush1.bf16.msra.mxu0 %v340
        %350 = vmatprep.subr.bf16.mxu0 0
        %351 = vmatpush1.bf16.msra.mxu0 %v341
        %352 = vmatprep.subr.bf16.mxu0 0
        %353 = vmatpush1.bf16.msra.mxu0 0
        %354 = vmatprep.subr.bf16.mxu0 0
        %355 = vmatpush1.bf16.msra.mxu0 0
        %356 = vmatprep.subr.bf16.mxu0 0
        %357 = vmatpush1.bf16.msra.mxu0 0
        %358 = vmatprep.subr.bf16.mxu0 0
        %359 = vmatpush1.bf16.msra.mxu0 0
        %360 = vmatprep.subr.bf16.mxu0 0
        %361 = vmatpush1.bf16.msra.mxu0 0
        %362 = vmatprep.subr.bf16.mxu0 0
        %363 = vmatpush1.bf16.msra.mxu0 0
        %364 = vmatprep.subr.bf16.mxu0 0
        %365 = vmatpush1.bf16.msra.mxu0 0
        %366 = vmatprep.subr.bf16.mxu0 0
        %367 = vmatpush1.bf16.msra.mxu0 0
        %368 = vmatprep.subr.bf16.mxu0 0
        %369 = vmatpush1.bf16.msra.mxu0 0
        %370 = vmatprep.subr.bf16.mxu0 0
        %371 = vmatpush1.bf16.msra.mxu0 0
        %372 = vmatprep.subr.bf16.mxu0 0
        %373 = vmatpush1.bf16.msra.mxu0 0
        %374 = vmatprep.subr.bf16.mxu0 0
        %375 = vmatpush1.bf16.msra.mxu0 0
        %376 = vmatprep.subr.bf16.mxu0 0
        %377 = vmatpush1.bf16.msra.mxu0 0
        %378 = vmatprep.subr.bf16.mxu0 0
        %379 = vmatpush1.bf16.msra.mxu0 0
        %380 = vmatprep.mubr.bf16.mxu0 0
        %381 = vmatmul.mubr.bf16.gmra.mrb[0].mxu0 %v346
        %v382 = vpop.f32.mrb[0].mxu0
        %v383 = vadd.f32 %v325, %v382
        %v384 = vpop.f32.mrb[0].mxu0
        %v385 = vpop.f32.mrb[0].mxu0
        %v386 = vadd.f32 %v325, %v385
        %v387 = vpop.f32.mrb[0].mxu0
        %388 = vdwg.mxu0
        %v389 = vmax.f32 %v383, 0.0
        %v390 = vmax.f32 %v386, 0.0
        %v391 = vld [vmem:[#allocation7] sm:$0xf]
        %v392 = vld [vmem:[#allocation7 + $0x4] sm:$0xf]
        %v393 = vld [vmem:[#allocation7 + $0x8] sm:$0xf]
        %v394 = vld [vmem:[#allocation7 + $0xc] sm:$0xf]
        %s395 = scalar_lea.vmem %s3, 1
        %v396 = vld [vmem:[%s395] sm:$0x1]
        %v397 = vpack.c.bf16 %v390, %v389
        %v399 = vlaneseq
        %v400 = vshrl.u32 %v399, 7
        %v401 = vsub.s32 0, %v400
        %v402 = vrot.slane %v396, %v401
        %v408 = vunpack.c.l.b16 %v391
        %v409 = vunpack.c.l.b16 %v392
        %v410 = vunpack.c.l.b16 %v393
        %v411 = vunpack.c.l.b16 %v394
        %v412 = vpack.c.b16 %v409, %v408
        %v413 = vpack.c.b16 %v411, %v410
        %v417 = vsel %vm344, %v397, 0
        %419 = vmatprep.subr.bf16.mxu0 0
        %420 = vmatpush1.bf16.msra.mxu0 %v412
        %421 = vmatprep.subr.bf16.mxu0 0
        %422 = vmatpush1.bf16.msra.mxu0 %v413
        %423 = vmatprep.subr.bf16.mxu0 0
        %424 = vmatpush1.bf16.msra.mxu0 0
        %425 = vmatprep.subr.bf16.mxu0 0
        %426 = vmatpush1.bf16.msra.mxu0 0
        %427 = vmatprep.subr.bf16.mxu0 0
        %428 = vmatpush1.bf16.msra.mxu0 0
        %429 = vmatprep.subr.bf16.mxu0 0
        %430 = vmatpush1.bf16.msra.mxu0 0
        %431 = vmatprep.subr.bf16.mxu0 0
        %432 = vmatpush1.bf16.msra.mxu0 0
        %433 = vmatprep.subr.bf16.mxu0 0
        %434 = vmatpush1.bf16.msra.mxu0 0
        %435 = vmatprep.subr.bf16.mxu0 0
        %436 = vmatpush1.bf16.msra.mxu0 0
        %437 = vmatprep.subr.bf16.mxu0 0
        %438 = vmatpush1.bf16.msra.mxu0 0
        %439 = vmatprep.subr.bf16.mxu0 0
        %440 = vmatpush1.bf16.msra.mxu0 0
        %441 = vmatprep.subr.bf16.mxu0 0
        %442 = vmatpush1.bf16.msra.mxu0 0
        %443 = vmatprep.subr.bf16.mxu0 0
        %444 = vmatpush1.bf16.msra.mxu0 0
        %445 = vmatprep.subr.bf16.mxu0 0
        %446 = vmatpush1.bf16.msra.mxu0 0
        %447 = vmatprep.subr.bf16.mxu0 0
        %448 = vmatpush1.bf16.msra.mxu0 0
        %449 = vmatprep.subr.bf16.mxu0 0
        %450 = vmatpush1.bf16.msra.mxu0 0
        %451 = vmatprep.mubr.bf16.mxu0 0
        %452 = vmatmul.mubr.bf16.gmra.mrb[0].mxu0 %v417
        %v453 = vpop.f32.mrb[0].mxu0
        %v454 = vadd.f32 %v402, %v453
        %v455 = vpop.f32.mrb[0].mxu0
        %v456 = vpop.f32.mrb[0].mxu0
        %v457 = vadd.f32 %v402, %v456
        %v458 = vpop.f32.mrb[0].mxu0
        %459 = vdwg.mxu0
        %v460 = vmax.f32 %v454, 0.0
        %v461 = vmax.f32 %v457, 0.0
        %s462 = scalar_lea.vmem [#allocation7], 16
        %v463 = vld [vmem:[%s462] sm:$0xf]
        %v464 = vld [vmem:[%s462 + $0x4] sm:$0xf]
        %v465 = vld [vmem:[%s462 + $0x8] sm:$0xf]
        %v466 = vld [vmem:[%s462 + $0xc] sm:$0xf]
        %s467 = scalar_lea.vmem %s3, 2
        %v468 = vld [vmem:[%s467] sm:$0x1]
        %v469 = vpack.c.bf16 %v461, %v460
        %v471 = vlaneseq
        %v472 = vshrl.u32 %v471, 7
        %v473 = vsub.s32 0, %v472
        %v474 = vrot.slane %v468, %v473
        %v480 = vunpack.c.l.b16 %v463
        %v481 = vunpack.c.l.b16 %v464
        %v482 = vunpack.c.l.b16 %v465
        %v483 = vunpack.c.l.b16 %v466
        %v484 = vpack.c.b16 %v481, %v480
        %v485 = vpack.c.b16 %v483, %v482
        %v489 = vsel %vm344, %v469, 0
        %491 = vmatprep.subr.bf16.mxu0 0
        %492 = vmatpush1.bf16.msra.mxu0 %v484
        %493 = vmatprep.subr.bf16.mxu0 0
        %494 = vmatpush1.bf16.msra.mxu0 %v485
        %495 = vmatprep.subr.bf16.mxu0 0
        %496 = vmatpush1.bf16.msra.mxu0 0
        %497 = vmatprep.subr.bf16.mxu0 0
        %498 = vmatpush1.bf16.msra.mxu0 0
        %499 = vmatprep.subr.bf16.mxu0 0
        %500 = vmatpush1.bf16.msra.mxu0 0
        %501 = vmatprep.subr.bf16.mxu0 0
        %502 = vmatpush1.bf16.msra.mxu0 0
        %503 = vmatprep.subr.bf16.mxu0 0
        %504 = vmatpush1.bf16.msra.mxu0 0
        %505 = vmatprep.subr.bf16.mxu0 0
        %506 = vmatpush1.bf16.msra.mxu0 0
        %507 = vmatprep.subr.bf16.mxu0 0
        %508 = vmatpush1.bf16.msra.mxu0 0
        %509 = vmatprep.subr.bf16.mxu0 0
        %510 = vmatpush1.bf16.msra.mxu0 0
        %511 = vmatprep.subr.bf16.mxu0 0
        %512 = vmatpush1.bf16.msra.mxu0 0
        %513 = vmatprep.subr.bf16.mxu0 0
        %514 = vmatpush1.bf16.msra.mxu0 0
        %515 = vmatprep.subr.bf16.mxu0 0
        %516 = vmatpush1.bf16.msra.mxu0 0
        %517 = vmatprep.subr.bf16.mxu0 0
        %518 = vmatpush1.bf16.msra.mxu0 0
        %519 = vmatprep.subr.bf16.mxu0 0
        %520 = vmatpush1.bf16.msra.mxu0 0
        %521 = vmatprep.subr.bf16.mxu0 0
        %522 = vmatpush1.bf16.msra.mxu0 0
        %523 = vmatprep.mubr.bf16.mxu0 0
        %524 = vmatmul.mubr.bf16.gmra.mrb[0].mxu0 %v489
        %v525 = vpop.f32.mrb[0].mxu0
        %v526 = vadd.f32 %v474, %v525
        %v527 = vpop.f32.mrb[0].mxu0
        %v528 = vpop.f32.mrb[0].mxu0
        %v529 = vadd.f32 %v474, %v528
        %v530 = vpop.f32.mrb[0].mxu0
        %531 = vdwg.mxu0
        %v532 = vmax.f32 %v526, 0.0
        %v533 = vmax.f32 %v529, 0.0
        %v534 = vsub.f32 %v532, %v533
        %v535 = vand.u32 2147483647, %v534
        %s536 = scalar_lea.vmem [#allocation7], 32
        %v537 = vld [vmem:[%s536] sm:$0xf]
        %v538 = vld [vmem:[%s536 + $0x4] sm:$0xf]
        %v539 = vld [vmem:[%s536 + $0x8] sm:$0xf]
        %v540 = vld [vmem:[%s536 + $0xc] sm:$0xf]
        %s541 = scalar_lea.vmem %s3, 3
        %v542 = vld [vmem:[%s541] sm:$0x1]
        %v543 = vpack.c.bf16 %v535, %v535
        %v545 = vlaneseq
        %v546 = vshrl.u32 %v545, 7
        %v547 = vsub.s32 0, %v546
        %v548 = vrot.slane %v542, %v547
        %v554 = vunpack.c.l.b16 %v537
        %v555 = vunpack.c.l.b16 %v538
        %v556 = vunpack.c.l.b16 %v539
        %v557 = vunpack.c.l.b16 %v540
        %v558 = vpack.c.b16 %v555, %v554
        %v559 = vpack.c.b16 %v557, %v556
        %v563 = vsel %vm344, %v543, 0
        %565 = vmatprep.subr.bf16.mxu0 0
        %566 = vmatpush1.bf16.msra.mxu0 %v558
        %567 = vmatprep.subr.bf16.mxu0 0
        %568 = vmatpush1.bf16.msra.mxu0 %v559
        %569 = vmatprep.subr.bf16.mxu0 0
        %570 = vmatpush1.bf16.msra.mxu0 0
        %571 = vmatprep.subr.bf16.mxu0 0
        %572 = vmatpush1.bf16.msra.mxu0 0
        %573 = vmatprep.subr.bf16.mxu0 0
        %574 = vmatpush1.bf16.msra.mxu0 0
        %575 = vmatprep.subr.bf16.mxu0 0
        %576 = vmatpush1.bf16.msra.mxu0 0
        %577 = vmatprep.subr.bf16.mxu0 0
        %578 = vmatpush1.bf16.msra.mxu0 0
        %579 = vmatprep.subr.bf16.mxu0 0
        %580 = vmatpush1.bf16.msra.mxu0 0
        %581 = vmatprep.subr.bf16.mxu0 0
        %582 = vmatpush1.bf16.msra.mxu0 0
        %583 = vmatprep.subr.bf16.mxu0 0
        %584 = vmatpush1.bf16.msra.mxu0 0
        %585 = vmatprep.subr.bf16.mxu0 0
        %586 = vmatpush1.bf16.msra.mxu0 0
        %587 = vmatprep.subr.bf16.mxu0 0
        %588 = vmatpush1.bf16.msra.mxu0 0
        %589 = vmatprep.subr.bf16.mxu0 0
        %590 = vmatpush1.bf16.msra.mxu0 0
        %591 = vmatprep.subr.bf16.mxu0 0
        %592 = vmatpush1.bf16.msra.mxu0 0
        %593 = vmatprep.subr.bf16.mxu0 0
        %594 = vmatpush1.bf16.msra.mxu0 0
        %595 = vmatprep.subr.bf16.mxu0 0
        %596 = vmatpush1.bf16.msra.mxu0 0
        %597 = vmatprep.mubr.bf16.mxu0 0
        %598 = vmatmul.mubr.bf16.gmra.mrb[0].mxu0 %v563
        %v599 = vpop.f32.mrb[0].mxu0
        %v600 = vadd.f32 %v548, %v599
        %v601 = vpop.f32.mrb[0].mxu0
        %v602 = vpop.f32.mrb[0].mxu0
        %v603 = vpop.f32.mrb[0].mxu0
        %604 = vdwg.mxu0
        %v605 = vmax.f32 %v600, 0.0
        %s606 = scalar_lea.vmem [#allocation7], 48
        %v607 = vld [vmem:[%s606] sm:$0xf]
        %v608 = vld [vmem:[%s606 + $0x4] sm:$0xf]
        %v609 = vld [vmem:[%s606 + $0x8] sm:$0xf]
        %v610 = vld [vmem:[%s606 + $0xc] sm:$0xf]
        %s611 = scalar_lea.vmem %s3, 4
        %v612 = vld [vmem:[%s611] sm:$0x1]
        %v613 = vpack.c.bf16 %v605, %v605
        %v615 = vlaneseq
        %v616 = vshrl.u32 %v615, 7
        %v617 = vsub.s32 0, %v616
        %v618 = vrot.slane %v612, %v617
        %v624 = vunpack.c.l.b16 %v607
        %v625 = vunpack.c.l.b16 %v608
        %v626 = vunpack.c.l.b16 %v609
        %v627 = vunpack.c.l.b16 %v610
        %v628 = vpack.c.b16 %v625, %v624
        %v629 = vpack.c.b16 %v627, %v626
        %v633 = vsel %vm344, %v613, 0
        %635 = vmatprep.subr.bf16.mxu0 0
        %636 = vmatpush1.bf16.msra.mxu0 %v628
        %637 = vmatprep.subr.bf16.mxu0 0
        %638 = vmatpush1.bf16.msra.mxu0 %v629
        %639 = vmatprep.subr.bf16.mxu0 0
        %640 = vmatpush1.bf16.msra.mxu0 0
        %641 = vmatprep.subr.bf16.mxu0 0
        %642 = vmatpush1.bf16.msra.mxu0 0
        %643 = vmatprep.subr.bf16.mxu0 0
        %644 = vmatpush1.bf16.msra.mxu0 0
        %645 = vmatprep.subr.bf16.mxu0 0
        %646 = vmatpush1.bf16.msra.mxu0 0
        %647 = vmatprep.subr.bf16.mxu0 0
        %648 = vmatpush1.bf16.msra.mxu0 0
        %649 = vmatprep.subr.bf16.mxu0 0
        %650 = vmatpush1.bf16.msra.mxu0 0
        %651 = vmatprep.subr.bf16.mxu0 0
        %652 = vmatpush1.bf16.msra.mxu0 0
        %653 = vmatprep.subr.bf16.mxu0 0
        %654 = vmatpush1.bf16.msra.mxu0 0
        %655 = vmatprep.subr.bf16.mxu0 0
        %656 = vmatpush1.bf16.msra.mxu0 0
        %657 = vmatprep.subr.bf16.mxu0 0
        %658 = vmatpush1.bf16.msra.mxu0 0
        %659 = vmatprep.subr.bf16.mxu0 0
        %660 = vmatpush1.bf16.msra.mxu0 0
        %661 = vmatprep.subr.bf16.mxu0 0
        %662 = vmatpush1.bf16.msra.mxu0 0
        %663 = vmatprep.subr.bf16.mxu0 0
        %664 = vmatpush1.bf16.msra.mxu0 0
        %665 = vmatprep.subr.bf16.mxu0 0
        %666 = vmatpush1.bf16.msra.mxu0 0
        %667 = vmatprep.mubr.bf16.mxu0 0
        %668 = vmatmul.mubr.bf16.gmra.mrb[0].mxu0 %v633
        %v669 = vpop.f32.mrb[0].mxu0
        %v670 = vadd.f32 %v618, %v669
        %v671 = vpop.f32.mrb[0].mxu0
        %v672 = vpop.f32.mrb[0].mxu0
        %v673 = vpop.f32.mrb[0].mxu0
        %674 = vdwg.mxu0
        %v675 = vmax.f32 %v670, 0.0
        %v676 = vpack.c.bf16 %v675, %v675
        %v677 = vld [vmem:[#allocation8] sm:$0xf]
        %v678 = vld [vmem:[#allocation8 + $0x4] sm:$0xf]
        %v679 = vld [vmem:[#allocation8 + $0x8] sm:$0xf]
        %v680 = vld [vmem:[#allocation8 + $0xc] sm:$0xf]
        %v681 = vld [vmem:[%s5] sm:$0x1]
        %v683 = vlaneseq
        %v684 = vshrl.u32 %v683, 7
        %v685 = vsub.s32 0, %v684
        %v686 = vrot.slane %v681, %v685
        %v692 = vunpack.c.l.b16 %v677
        %v693 = vunpack.c.l.b16 %v678
        %v694 = vunpack.c.l.b16 %v679
        %v695 = vunpack.c.l.b16 %v680
        %v696 = vpack.c.b16 %v693, %v692
        %v697 = vpack.c.b16 %v695, %v694
        %v701 = vsel %vm344, %v676, 0
        %703 = vmatprep.subr.bf16.mxu0 0
        %704 = vmatpush1.bf16.msra.mxu0 %v696
        %705 = vmatprep.subr.bf16.mxu0 0
        %706 = vmatpush1.bf16.msra.mxu0 %v697
        %707 = vmatprep.subr.bf16.mxu0 0
        %708 = vmatpush1.bf16.msra.mxu0 0
        %709 = vmatprep.subr.bf16.mxu0 0
        %710 = vmatpush1.bf16.msra.mxu0 0
        %711 = vmatprep.subr.bf16.mxu0 0
        %712 = vmatpush1.bf16.msra.mxu0 0
        %713 = vmatprep.subr.bf16.mxu0 0
        %714 = vmatpush1.bf16.msra.mxu0 0
        %715 = vmatprep.subr.bf16.mxu0 0
        %716 = vmatpush1.bf16.msra.mxu0 0
        %717 = vmatprep.subr.bf16.mxu0 0
        %718 = vmatpush1.bf16.msra.mxu0 0
        %719 = vmatprep.subr.bf16.mxu0 0
        %720 = vmatpush1.bf16.msra.mxu0 0
        %721 = vmatprep.subr.bf16.mxu0 0
        %722 = vmatpush1.bf16.msra.mxu0 0
        %723 = vmatprep.subr.bf16.mxu0 0
        %724 = vmatpush1.bf16.msra.mxu0 0
        %725 = vmatprep.subr.bf16.mxu0 0
        %726 = vmatpush1.bf16.msra.mxu0 0
        %727 = vmatprep.subr.bf16.mxu0 0
        %728 = vmatpush1.bf16.msra.mxu0 0
        %729 = vmatprep.subr.bf16.mxu0 0
        %730 = vmatpush1.bf16.msra.mxu0 0
        %731 = vmatprep.subr.bf16.mxu0 0
        %732 = vmatpush1.bf16.msra.mxu0 0
        %733 = vmatprep.subr.bf16.mxu0 0
        %734 = vmatpush1.bf16.msra.mxu0 0
        %735 = vmatprep.mubr.bf16.mxu0 0
        %736 = vmatmul.mubr.bf16.gmra.mrb[0].mxu0 %v701
        %v737 = vpop.f32.mrb[0].mxu0
        %v738 = vadd.f32 %v686, %v737
        %v739 = vpop.f32.mrb[0].mxu0
        %v740 = vpop.f32.mrb[0].mxu0
        %v741 = vpop.f32.mrb[0].mxu0
        %742 = vdwg.mxu0
        %v743 = vsub.f32 0.0, %v738
        %v744 = vmul.f32 %v743, 1.442695
        %v745 = vpow.pop %v744
        %v746 = vadd.f32 %v745, 1.0
        %v747 = vrcp.pop %v746
        %748 = vst [vmem:[%s312] sm:$0xff] %v747
        %s749 = sand.u32 %s164, 1
        %s750 = scalar_lea.sflag [#allocation4], %s749
        %s751 = sand.u32 %s164, 1
        %s752 = smul.addr %s751, 8
        %s753 = scalar_lea.vmem [#allocation10], %s752
        // Predicated region
        $region61: #{tpu_custom_call.1} parent=43 // pred_check
          %p754 = pneg %p174
        $region62: #{tpu_custom_call.1} parent=43 // pred_check_branch
          %756 = sbr.rel (%p754) target = $region64
        $region63: #{tpu_custom_call.1} parent=43 // pred_region
          %s758 = ssub.s32 128, 128
          %759 = vsyncadd %s750, %s758
          %s760 = smul.addr %s25, 128
          %s761 = scalar_lea.hbm %s6, %s760
          %s763 = sshll.u32 %s753, 4
          %s764 = int_to_ptr.vmem [resolvable:$true] %s763
          %766 = dma.vmem_to_hbm [thread:$0]  %s764, 128, %s761, %s750
        $region64: #{tpu_custom_call.1} parent=43 // pred_fallthru
          _
      $region44: #{tpu_custom_call.1} parent=5 // pred_fallthru
        _
      %p767 = scmp.le.s32.totalorder 2, %s20
      // Predicated region
      $region65: #{tpu_custom_call.1} parent=5 // pred_check
        %p768 = pneg %p767
      $region66: #{tpu_custom_call.1} parent=5 // pred_check_branch
        %770 = sbr.rel (%p768) target = $region68
      $region67: #{tpu_custom_call.1} parent=5 // pred_region
        %s771 = ssub.s32 %s20, 2
        // Predicated region
        $region69: #{tpu_custom_call.1} parent=67 // pred_check
          %p772 = pneg %p180
        $region70: #{tpu_custom_call.1} parent=67 // pred_check_branch
          %774 = sbr.rel (%p772) target = $region72
        $region71: #{tpu_custom_call.1} parent=67 // pred_region
          %s775 = sand.u32 %s165, 1
          %s776 = scalar_lea.sflag [#allocation4], %s775
          %s777 = sand.u32 %s165, 1
          %s778 = smul.addr %s777, 8
          %s779 = scalar_lea.vmem [#allocation10], %s778
          %780 = dma.done %s776, 128
        $region72: #{tpu_custom_call.1} parent=67 // pred_fallthru
          _
      $region68: #{tpu_custom_call.1} parent=5 // pred_fallthru
        _
    $region6: #{tpu_custom_call.1} parent=1 // loop_footer
      %s24 = sadd.s32 1, %s20
    $region7: #{tpu_custom_call.1} parent=1 // loop_footer_branch
      %19 = sbr.rel target = $region3
    $region8: #{tpu_custom_call.1} parent=1 // loop_exit
      _
    %781 = vsyncpa [#allocation3], 1
    %s782 = scalar_lea.sflag [#allocation3], 1
    %783 = vsyncpa %s782, 1
    %784 = vsyncpa [#allocation6], 1
    %785 = vsyncpa [#allocation9], 1
    %786 = vsyncpa [#allocation4], 1
    %s787 = scalar_lea.sflag [#allocation4], 1
    %788 = vsyncpa %s787, 1

</llo_original>
